<compile_context>
chip_gen: v7x
topology: tpu7x:2x2x1
jax: 0.10.0
libtpu: 0.0.40
codegen_flags: <defaults>
</compile_context>

<pallas_src>
import functools

import jax
import jax.numpy as jnp
from jax.experimental import pallas as pl
from jax.experimental.pallas import tpu as pltpu


LANE = 128                                   # lane (last-dim) tile width
FUSED_VMEM_BUDGET = 28 * 1024 * 1024         # conservative: fits v7x's 32 MiB default scoped VMEM
SINGLE_BUFFER_MIN_BYTES = 4 * 1024 * 1024    # single-buffer grid-invariant weights above this


def _round_up(n, m):
    return ((n + m - 1) // m) * m


def _sublane(dtype):
    # dtype-aware sublane rounding: 8 rows for 4-byte, 16 for 2-byte, 32 for 1-byte types.
    return max(8, 32 // jnp.dtype(dtype).itemsize)


def _batch_tile_candidates(b_pad, sub, max_tile=512):
    """Batch tiles that divide b_pad, are sublane multiples, and (when possible) leave
    >= 2 grid steps so v7x's second TensorCore gets work. Largest first (big tiles
    amortize the ~0.35us per-grid-step overhead)."""
    cap = b_pad if b_pad < 2 * sub else b_pad // 2
    cap = min(cap, max_tile)
    cands = [t for t in range(sub, cap + 1, sub) if b_pad % t == 0]
    return sorted(cands, reverse=True) or [b_pad]


def _largest_divisor_tile(n, sub, cap):
    best = sub if n % sub == 0 else n
    for t in range(sub, min(cap, n) + 1, sub):
        if n % t == 0:
            best = t
    return best


# ----------------------------- blocks (params) ----------------------------- #

class Linear:
    """PyTorch-style Linear. Weight is transposed to (in, out), cast to bf16 and
    zero-padded to lane-dense 128 multiples ONCE at construction time."""

    def __init__(self, weight, bias, *, weight_dtype=jnp.bfloat16):
        weight = jnp.asarray(weight)
        bias = jnp.asarray(bias)
        self.out_features, self.in_features = weight.shape
        self.in_pad = _round_up(self.in_features, LANE)
        self.out_pad = _round_up(self.out_features, LANE)
        w_t = weight.T.astype(weight_dtype)                  # (in, out) — done ONCE
        self.w = jnp.pad(w_t, ((0, self.in_pad - self.in_features),
                               (0, self.out_pad - self.out_features)))
        # Bias stays f32: the bias-add / ReLU epilogue runs in f32 on the VPU.
        self.b = jnp.pad(bias.astype(jnp.float32),
                         (0, self.out_pad - self.out_features)).reshape(1, self.out_pad)

    def __call__(self, x):
        return _forward([self], x)


class ReLU:
    def __call__(self, x):
        return _forward([self], x)


# --------------------------- chain planning helpers ------------------------ #

def _plan_stages(blocks):
    """Group blocks into matmul stages; a ReLU fuses into the preceding Linear's epilogue."""
    stages = []
    for blk in blocks:
        if isinstance(blk, Linear):
            stages.append({"linear": blk, "relu": False})
        elif isinstance(blk, ReLU):
            if stages and stages[-1]["linear"] is not None and not stages[-1]["relu"]:
                stages[-1]["relu"] = True
            else:
                stages.append({"linear": None, "relu": True})
        else:
            raise TypeError(f"unfusable block type: {type(blk)!r}")
    return stages


def _fused_vmem_bytes(tm, d_in_pad, d_out_pad, linears, act_itemsize, w_buffers):
    n = 2 * tm * d_in_pad * act_itemsize            # input block (double-buffered)
    n += 2 * tm * d_out_pad * act_itemsize          # output block (double-buffered)
    for lin in linears:
        n += w_buffers * lin.in_pad * lin.out_pad * lin.w.dtype.itemsize
        n += 2 * lin.out_pad * lin.b.dtype.itemsize
    widths = [d_in_pad] + [lin.out_pad for lin in linears]
    n += tm * max(widths) * 4                       # live f32 intermediate vregs
    return n


# ---------------------- fused whole-chain Pallas kernel --------------------- #

def _make_fused_kernel(stage_plan, n_linear):
    """Whole block chain in one kernel body. The hidden activation stays a live value
    between stages — no VMEM scratch round-trip."""
    def kernel(x_ref, *rest):
        params = rest[:2 * n_linear]
        o_ref = rest[2 * n_linear]
        h = x_ref[...]
        li = 0
        for has_linear, relu in stage_plan:
            if has_linear:
                w = params[2 * li][...]
                b = params[2 * li + 1][...]
                # bf16 x bf16 MXU matmul with f32 accumulation; bias add in f32.
                h = jnp.dot(h.astype(w.dtype), w,
                            preferred_element_type=jnp.float32) + b.astype(jnp.float32)
                li += 1
            if relu:
                h = jnp.maximum(h, 0.0)            # fused VPU epilogue, f32
        o_ref[...] = h.astype(o_ref.dtype)         # lane-dense unmasked store
    return kernel


def _fused_chain(x_pad, stages, linears, tm, d_in_pad, d_out_pad, single_buffer, vmem_need):
    b_pad = x_pad.shape[0]
    n_linear = len(linears)
    stage_plan = tuple((st["linear"] is not None, st["relu"]) for st in stages)

    in_specs = [pl.BlockSpec((tm, d_in_pad), lambda i: (i, 0))]
    operands = [x_pad]
    for lin in linears:
        if single_buffer:
            # Grid-invariant weights: one VMEM copy instead of the default double buffer.
            # Matters most on v7x (64 MiB VMEM): ~doubles the largest resident MLP.
            w_spec = pl.BlockSpec((lin.in_pad, lin.out_pad), lambda i: (0, 0),
                                  pipeline_mode=pl.Buffered(1))
        else:
            w_spec = pl.BlockSpec((lin.in_pad, lin.out_pad), lambda i: (0, 0))
        in_specs += [w_spec, pl.BlockSpec((1, lin.out_pad), lambda i: (0, 0))]
        operands += [lin.w, lin.b]

    flops = 2 * b_pad * sum(l.in_pad * l.out_pad for l in linears)
    bytes_accessed = (int(x_pad.size) * x_pad.dtype.itemsize
                      + b_pad * d_out_pad * x_pad.dtype.itemsize
                      + sum(int(l.w.size) * l.w.dtype.itemsize
                            + int(l.b.size) * l.b.dtype.itemsize for l in linears))
    vmem_limit = min(max(32 * 1024 * 1024, int(vmem_need) * 3 // 2), 48 * 1024 * 1024)

    return pl.pallas_call(
        _make_fused_kernel(stage_plan, n_linear),
        out_shape=jax.ShapeDtypeStruct((b_pad, d_out_pad), x_pad.dtype),
        grid=(b_pad // tm,),
        in_specs=in_specs,
        out_specs=pl.BlockSpec((tm, d_out_pad), lambda i: (i, 0)),
        compiler_params=pltpu.CompilerParams(
            dimension_semantics=("parallel",),           # batch shards across v7x's 2 TCs
            vmem_limit_bytes=vmem_limit),
        cost_estimate=pl.CostEstimate(flops=flops, transcendentals=0,
                                      bytes_accessed=bytes_accessed),
    )(*operands)


# -------------------- K/N-tiled streaming fallback (big layers) ------------- #

def _tiled_linear_kernel(x_ref, w_ref, b_ref, o_ref, acc_ref, *, apply_relu):
    @pl.when(pl.program_id(2) == 0)
    def _():
        acc_ref[...] = jnp.zeros_like(acc_ref)
    w = w_ref[...]
    acc_ref[...] += jnp.dot(x_ref[...].astype(w.dtype), w,
                            preferred_element_type=jnp.float32)

    @pl.when(pl.program_id(2) == pl.num_programs(2) - 1)
    def _():
        y = acc_ref[...] + b_ref[...].astype(jnp.float32)
        if apply_relu:
            y = jnp.maximum(y, 0.0)
        o_ref[...] = y.astype(o_ref.dtype)


def _tiled_linear(x_pad, lin, apply_relu):
    """Fallback when weights cannot be VMEM-resident: stream W over an (M, N, K) grid,
    reduction axis last ('arbitrary'), with an f32 accumulator scratch."""
    b_pad, k_pad = x_pad.shape
    assert k_pad == lin.in_pad
    n_pad = lin.out_pad
    sub = _sublane(x_pad.dtype)
    tm = _largest_divisor_tile(b_pad, sub, cap=256)
    tn = 256 if n_pad % 256 == 0 else 128            # 256-wide N keeps v6e/v7x MXU cadence
    tk = 512 if k_pad % 512 == 0 else (256 if k_pad % 256 == 0 else 128)
    grid = (b_pad // tm, n_pad // tn, k_pad // tk)

    flops = 2 * b_pad * k_pad * n_pad
    bytes_accessed = (int(x_pad.size) * x_pad.dtype.itemsize
                      + int(lin.w.size) * lin.w.dtype.itemsize
                      + int(lin.b.size) * lin.b.dtype.itemsize
                      + b_pad * n_pad * x_pad.dtype.itemsize)

    return pl.pallas_call(
        functools.partial(_tiled_linear_kernel, apply_relu=apply_relu),
        out_shape=jax.ShapeDtypeStruct((b_pad, n_pad), x_pad.dtype),
        grid=grid,
        in_specs=[pl.BlockSpec((tm, tk), lambda i, j, k: (i, k)),
                  pl.BlockSpec((tk, tn), lambda i, j, k: (k, j)),
                  pl.BlockSpec((1, tn), lambda i, j, k: (0, j))],
        out_specs=pl.BlockSpec((tm, tn), lambda i, j, k: (i, j)),
        scratch_shapes=[pltpu.VMEM((tm, tn), jnp.float32)],
        compiler_params=pltpu.CompilerParams(
            dimension_semantics=("parallel", "parallel", "arbitrary"),
            vmem_limit_bytes=32 * 1024 * 1024),
        cost_estimate=pl.CostEstimate(flops=flops, transcendentals=0,
                                      bytes_accessed=bytes_accessed),
    )(x_pad, lin.w, lin.b)


# --------------------------------- dispatcher ------------------------------- #

def _forward(blocks, x, *, fused_vmem_budget=FUSED_VMEM_BUDGET):
    if not blocks:
        return x
    orig_shape = x.shape
    if x.ndim == 1:
        x = x[None, :]
    elif x.ndim > 2:
        x = x.reshape(-1, x.shape[-1])

    batch, d_in = x.shape
    stages = _plan_stages(blocks)
    linears = [st["linear"] for st in stages if st["linear"] is not None]

    cur = d_in
    for lin in linears:
        assert lin.in_features == cur, "block input width mismatch"
        cur = lin.out_features
    d_out = cur
    d_in_pad = _round_up(d_in, LANE)
    d_out_pad = linears[-1].out_pad if linears else d_in_pad

    sub = _sublane(x.dtype)
    b_pad = _round_up(batch, sub)

    weight_bytes = sum(int(l.w.size) * l.w.dtype.itemsize for l in linears)
    single_buffer = weight_bytes > SINGLE_BUFFER_MIN_BYTES
    w_buffers = 1 if single_buffer else 2

    tm = vmem_need = None
    for t in _batch_tile_candidates(b_pad, sub, max_tile=512):
        need = _fused_vmem_bytes(t, d_in_pad, d_out_pad, linears,
                                 x.dtype.itemsize, w_buffers)
        if need <= fused_vmem_budget:
            tm, vmem_need = t, need
            break

    # Pad ONCE around the whole chain (slice once at the end); intermediates in the
    # streaming fallback stay padded so no per-layer pad/slice glue touches HBM.
    x_pad = jnp.pad(x, ((0, b_pad - batch), (0, d_in_pad - d_in)))

    if tm is not None:
        y_pad = _fused_chain(x_pad, stages, linears, tm, d_in_pad, d_out_pad,
                             single_buffer, vmem_need)
    else:
        h = x_pad
        for st in stages:
            if st["linear"] is not None:
                h = _tiled_linear(h, st["linear"], st["relu"])
            elif st["relu"]:
                h = jnp.maximum(h, 0.0)   # ReLU with no preceding Linear (rare corner)
        y_pad = h

    y = y_pad[:batch, :d_out]
    if len(orig_shape) == 1:
        return y[0]
    if len(orig_shape) > 2:
        return y.reshape(orig_shape[:-1] + (d_out,))
    return y


# --------------------------------- container -------------------------------- #

class MySequential:
    """Mirrors the PyTorch MySequential: stores blocks by index, applies them in order."""

    def __init__(self, *args):
        self._modules = {}
        for idx, block in enumerate(args):
            self._modules[idx] = block

    def __call__(self, x):
        blocks = list(self._modules.values())
        if blocks and all(isinstance(b, (Linear, ReLU)) for b in blocks):
            # Whole chain dispatched through the Pallas path (fused or streamed).
            return _forward(blocks, x)
        # TODO(synk): blocks other than Linear/ReLU fall back to their own __call__.
        for block in blocks:
            x = block(x)
        return x


# --------------------------------- demo ------------------------------------ #

def make_linear_params(key, in_features, out_features, dtype=jnp.float32):
    # Deterministic init mimicking nn.Linear's uniform(-1/sqrt(in), 1/sqrt(in)).
    kw, kb = jax.random.split(key)
    bound = 1.0 / (in_features ** 0.5)
    w = jax.random.uniform(kw, (out_features, in_features), dtype, -bound, bound)
    b = jax.random.uniform(kb, (out_features,), dtype, -bound, bound)
    return w, b


if __name__ == "__main__":
    key = jax.random.PRNGKey(0)
    k_in, k1, k2, k3, k4, k5 = jax.random.split(key, 6)

    # ---- Test 1: fused single-kernel path (whole Linear->ReLU->Linear chain in one
    # pallas_call, 2 batch grid steps so both v7x TensorCores get work). ----
    batch, d_in, d_hidden, d_out = 16, 32, 64, 16
    w1, b1 = make_linear_params(k1, d_in, d_hidden)
    w2, b2 = make_linear_params(k2, d_hidden, d_out)
    net = MySequential(Linear(w1, b1), ReLU(), Linear(w2, b2))
    fwd = jax.jit(lambda inp: net(inp))
    x = jax.random.normal(k_in, (batch, d_in), jnp.float32)
    y = jax.block_until_ready(fwd(x))
    ref = jnp.maximum(x @ w1.T + b1, 0.0) @ w2.T + b2
    assert y.shape == (batch, d_out)
    # Weights are stored bf16 (f32 accumulation) -> loosened tolerance vs f32 reference.
    assert jnp.allclose(y, ref, atol=5e-2, rtol=5e-2), float(jnp.max(jnp.abs(y - ref)))

    # ---- Test 2: K/N-tiled streaming fallback (the path used when padded weights do
    # not fit the VMEM budget), forced here with a zero fused-VMEM budget. ----
    batch2, d_in2, d_hid2, d_out2 = 64, 256, 512, 128
    w3, b3 = make_linear_params(k3, d_in2, d_hid2)
    w4, b4 = make_linear_params(k4, d_hid2, d_out2)
    blocks2 = [Linear(w3, b3), ReLU(), Linear(w4, b4)]
    x2 = jax.random.normal(k5, (batch2, d_in2), jnp.float32)
    fwd2 = jax.jit(lambda inp: _forward(blocks2, inp, fused_vmem_budget=0))
    y2 = jax.block_until_ready(fwd2(x2))
    ref2 = jnp.maximum(x2 @ w3.T + b3, 0.0) @ w4.T + b4
    assert y2.shape == (batch2, d_out2)
    assert jnp.allclose(y2, ref2, atol=5e-2, rtol=5e-2), float(jnp.max(jnp.abs(y2 - ref2)))

    print("KERNEL_OK")
</pallas_src>

<mosaic_0001>
module attributes {stable_mosaic.version = 11 : i64} {
  func.func @kernel(%arg0: i32, %arg1: memref<8x128xf32, #tpu.memory_space<vmem>>, %arg2: memref<128x128xbf16, #tpu.memory_space<vmem>>, %arg3: memref<1x128xf32, #tpu.memory_space<vmem>>, %arg4: memref<128x128xbf16, #tpu.memory_space<vmem>>, %arg5: memref<1x128xf32, #tpu.memory_space<vmem>>, %arg6: memref<8x128xf32, #tpu.memory_space<vmem>>) attributes {dimension_semantics = [#tpu.dimension_semantics<parallel>], iteration_bounds = array<i64: 2>, scalar_prefetch = 0 : i64, scratch_operands = 0 : i64, tpu.core_type = #tpu.core_type<tc>, window_params = [{transform_indices = @transform_0, window_bounds = array<i64: 8, 128>}, {pipeline_mode = #tpu.pipeline_mode<synchronous>, transform_indices = @transform_1, window_bounds = array<i64: 128, 128>}, {pipeline_mode = #tpu.pipeline_mode<synchronous>, transform_indices = @transform_2, window_bounds = array<i64: 1, 128>}, {pipeline_mode = #tpu.pipeline_mode<synchronous>, transform_indices = @transform_3, window_bounds = array<i64: 128, 128>}, {pipeline_mode = #tpu.pipeline_mode<synchronous>, transform_indices = @transform_4, window_bounds = array<i64: 1, 128>}, {transform_indices = @transform_5, window_bounds = array<i64: 8, 128>}]} {
    %c0 = arith.constant 0 : index
    %c0_0 = arith.constant 0 : index
    %0 = vector.load %arg1[%c0, %c0_0] : memref<8x128xf32, #tpu.memory_space<vmem>>, vector<8x128xf32>
    %c0_1 = arith.constant 0 : index
    %c0_2 = arith.constant 0 : index
    %1 = vector.load %arg2[%c0_1, %c0_2] : memref<128x128xbf16, #tpu.memory_space<vmem>>, vector<128x128xbf16>
    %c0_3 = arith.constant 0 : index
    %c0_4 = arith.constant 0 : index
    %2 = vector.load %arg3[%c0_3, %c0_4] : memref<1x128xf32, #tpu.memory_space<vmem>>, vector<1x128xf32>
    %3 = arith.truncf %0 : vector<8x128xf32> to vector<8x128xbf16>
    %cst = arith.constant dense<0.000000e+00> : vector<8x128xf32>
    %4 = tpu.matmul %3, %1, %cst {dimension_numbers = #tpu.dot_dimension_numbers<[1], [0], [0], [1], [0, 0, 1, 1], [], []>} : vector<8x128xbf16>, vector<128x128xbf16>, vector<8x128xf32> -> vector<8x128xf32>
    %5 = vector.broadcast %2 : vector<1x128xf32> to vector<8x128xf32>
    %6 = arith.addf %4, %5 : vector<8x128xf32>
    %cst_5 = arith.constant 0.000000e+00 : f32
    %7 = vector.broadcast %cst_5 : f32 to vector<8x128xf32>
    %8 = arith.maximumf %6, %7 : vector<8x128xf32>
    %c0_6 = arith.constant 0 : index
    %c0_7 = arith.constant 0 : index
    %9 = vector.load %arg4[%c0_6, %c0_7] : memref<128x128xbf16, #tpu.memory_space<vmem>>, vector<128x128xbf16>
    %c0_8 = arith.constant 0 : index
    %c0_9 = arith.constant 0 : index
    %10 = vector.load %arg5[%c0_8, %c0_9] : memref<1x128xf32, #tpu.memory_space<vmem>>, vector<1x128xf32>
    %11 = arith.truncf %8 : vector<8x128xf32> to vector<8x128xbf16>
    %cst_10 = arith.constant dense<0.000000e+00> : vector<8x128xf32>
    %12 = tpu.matmul %11, %9, %cst_10 {dimension_numbers = #tpu.dot_dimension_numbers<[1], [0], [0], [1], [0, 0, 1, 1], [], []>} : vector<8x128xbf16>, vector<128x128xbf16>, vector<8x128xf32> -> vector<8x128xf32>
    %13 = vector.broadcast %10 : vector<1x128xf32> to vector<8x128xf32>
    %14 = arith.addf %12, %13 : vector<8x128xf32>
    %c0_11 = arith.constant 0 : index
    %c0_12 = arith.constant 0 : index
    %15 = vector.load %arg6[%c0_11, %c0_12] : memref<8x128xf32, #tpu.memory_space<vmem>>, vector<8x128xf32>
    tpu.vector_store %arg6[%c0_11, %c0_12], %14 {strides = array<i32>} : memref<8x128xf32, #tpu.memory_space<vmem>>, vector<8x128xf32>,
    return
  }
  func.func @transform_0(%arg0: i32) -> (i32, i32) {
    %c0_i32 = arith.constant 0 : i32
    %c0_i32_0 = arith.constant 0 : i32
    return %arg0, %c0_i32 : i32, i32
  }
  func.func @transform_1(%arg0: i32) -> (i32, i32) {
    %c0_i32 = arith.constant 0 : i32
    %c0_i32_0 = arith.constant 0 : i32
    %c0_i32_1 = arith.constant 0 : i32
    return %c0_i32, %c0_i32_0 : i32, i32
  }
  func.func @transform_2(%arg0: i32) -> (i32, i32) {
    %c0_i32 = arith.constant 0 : i32
    %c0_i32_0 = arith.constant 0 : i32
    %c0_i32_1 = arith.constant 0 : i32
    return %c0_i32, %c0_i32_0 : i32, i32
  }
  func.func @transform_3(%arg0: i32) -> (i32, i32) {
    %c0_i32 = arith.constant 0 : i32
    %c0_i32_0 = arith.constant 0 : i32
    %c0_i32_1 = arith.constant 0 : i32
    return %c0_i32, %c0_i32_0 : i32, i32
  }
  func.func @transform_4(%arg0: i32) -> (i32, i32) {
    %c0_i32 = arith.constant 0 : i32
    %c0_i32_0 = arith.constant 0 : i32
    %c0_i32_1 = arith.constant 0 : i32
    return %c0_i32, %c0_i32_0 : i32, i32
  }
  func.func @transform_5(%arg0: i32) -> (i32, i32) {
    %c0_i32 = arith.constant 0 : i32
    %c0_i32_0 = arith.constant 0 : i32
    return %arg0, %c0_i32 : i32, i32
  }
}

</mosaic_0001>

<llo_original>
// kernel: _lambda_.1
$region0: #{_lambda_.1}
  #allocation0 [shape = 'u32[]', space=smem, size = 0x4, offset = 0x4, fixed_abs, tag = 'smem constant byte address 0x4 - core index']
  #allocation1 [shape = 'u32[144,128]{1,0:T(1,128)}', space=vmem, size = 0x12000, scoped, tag = 'internal scratch']
  %s0 = inlined_call_operand.vmem [shape: f32[16,128], index: 0, kind: input, shape index: {}]
  %s1 = inlined_call_operand.hbm [shape: bf16[128,128], index: 1, kind: input, shape index: {}]
  %s2 = inlined_call_operand.vmem [shape: f32[1,128], index: 2, kind: input, shape index: {}]
  %s3 = inlined_call_operand.hbm [shape: bf16[128,128], index: 3, kind: input, shape index: {}]
  %s4 = inlined_call_operand.vmem [shape: f32[1,128], index: 4, kind: input, shape index: {}]
  %s5 = inlined_call_operand.hbm [shape: f32[16,128], index: 5, kind: output, shape index: {}]
  %s6 = sld [smem:[#allocation0]]
  $region61: #{_lambda_.1} parent=0
    _
  %s8 = ssub.s32 1, %s6
  %s9 = scalar_select 0, %s8, %s6
  $region1: #{_lambda_.1} parent=0
    #allocation2 [shape = 'u8[32768]{0}', space=vmem, size = 0x8000, scoped, tag = 'input window, operand 1, single buffered']
    #allocation3 [shape = 's32[2]{0}', space=sflag, size = 0x8, scoped, tag = 'scoped memory for _lambda_.1']
    #allocation4 [shape = 's32[2]{0}', space=sflag, size = 0x8, scoped, tag = 'scoped memory for _lambda_.1']
    #allocation5 [shape = 'u8[32768]{0}', space=vmem, size = 0x8000, scoped, tag = 'input window, operand 3, single buffered']
    #allocation6 [shape = 's32[1]{0}', space=sflag, size = 0x4, scoped, tag = 'scoped memory for _lambda_.1']
    #allocation7 [shape = 'u8[8192]{0}', space=vmem, size = 0x2000, scoped, tag = 'output window, operand 0']
    %10 = vsyncpa [#allocation3], 0
    %11 = vsyncpa [#allocation6], 0
    %12 = vsyncpa [#allocation4], 0
    %s13 = scalar_lea.sflag [#allocation4], 1
    %14 = vsyncpa %s13, 0
    loop: start=0, step=1, limit=4
    $region2: #{_lambda_.1} parent=1 // loop_pre_header
      _
    $region3: #{_lambda_.1} parent=1 // loop_header
      %s16 = sphi 0, %s20
      %p17 = scmp.ge.s32.totalorder %s16, 4
      %s26 = sphi 0, %s28
      %s29 = sphi 0, %s26
      %s30 = sphi 0, %s29
      %s46 = sphi 0, %s30
      %s50 = sphi 0, %s50
      %s52 = sphi 0, %s50
      %s53 = sphi 0, %s52
      %s67 = sphi 0, %s53
      %s71 = sphi 0, %s71
      %s73 = sphi 0, %s71
      %s74 = sphi 0, %s73
      %s88 = sphi 0, %s74
      %s92 = sphi 0, %s92
      %s94 = sphi 0, %s92
      %s95 = sphi 0, %s94
      %s109 = sphi 0, %s95
      %s113 = sphi 0, %s113
      %s115 = sphi 0, %s113
      %s116 = sphi 0, %s115
      %s130 = sphi 0, %s116
      %s136 = sphi 0, %s138
      %s139 = sphi 0, %s136
      %s140 = sphi 0, %s139
      %s156 = sphi 0, %s140
    $region4: #{_lambda_.1} parent=1 // loop_header_branch
      %19 = sbr.rel (%p17) target = $region8
    $region5: #{_lambda_.1} parent=1 // loop_body
      %s21 = ssub.s32 %s16, 1
      %s22 = ssub.s32 %s16, 2
      %s23 = sadd.s32 %s16, 1
      %s24 = ssub.s32 %s16, %s23
      %p25 = scmp.eq.s32.totalorder %s24, 0
      %s27 = sadd.s32 %s26, 1
      %s28 = scalar_select %p25, %s26, %s27
      %p31 = pneg %p25
      %p32 = scmp.eq.s32.totalorder %s16, 1
      %p33 = por %p31, %p32
      %p34 = scmp.ne.s32.totalorder %s26, %s29
      %p35 = scmp.eq.s32.totalorder %s16, 0
      %p36 = por %p34, %p35
      %p37 = scmp.ne.s32.totalorder %s26, %s29
      %p38 = scmp.eq.s32.totalorder %s21, 1
      %p39 = por %p37, %p38
      %p40 = scmp.ne.s32.totalorder %s29, %s30
      %p41 = scmp.eq.s32.totalorder %s21, 0
      %p42 = por %p40, %p41
      %p43 = scmp.ne.s32.totalorder %s29, %s30
      %p44 = scmp.eq.s32.totalorder %s22, 1
      %p45 = por %p43, %p44
      %p47 = scmp.ne.s32.totalorder %s30, %s46
      %p48 = scmp.eq.s32.totalorder %s22, 0
      %p49 = por %p47, %p48
      %s51 = sadd.s32 %s50, 1
      %p54 = scmp.eq.s32.totalorder %s16, 1
      %p55 = scmp.ne.s32.totalorder %s50, %s52
      %p56 = scmp.eq.s32.totalorder %s16, 0
      %p57 = por %p55, %p56
      %p58 = scmp.ne.s32.totalorder %s50, %s52
      %p59 = scmp.eq.s32.totalorder %s21, 1
      %p60 = por %p58, %p59
      %p61 = scmp.ne.s32.totalorder %s52, %s53
      %p62 = scmp.eq.s32.totalorder %s21, 0
      %p63 = por %p61, %p62
      %p64 = scmp.ne.s32.totalorder %s52, %s53
      %p65 = scmp.eq.s32.totalorder %s22, 1
      %p66 = por %p64, %p65
      %p68 = scmp.ne.s32.totalorder %s53, %s67
      %p69 = scmp.eq.s32.totalorder %s22, 0
      %p70 = por %p68, %p69
      %s72 = sadd.s32 %s71, 1
      %p75 = scmp.eq.s32.totalorder %s16, 1
      %p76 = scmp.ne.s32.totalorder %s71, %s73
      %p77 = scmp.eq.s32.totalorder %s16, 0
      %p78 = por %p76, %p77
      %p79 = scmp.ne.s32.totalorder %s71, %s73
      %p80 = scmp.eq.s32.totalorder %s21, 1
      %p81 = por %p79, %p80
      %p82 = scmp.ne.s32.totalorder %s73, %s74
      %p83 = scmp.eq.s32.totalorder %s21, 0
      %p84 = por %p82, %p83
      %p85 = scmp.ne.s32.totalorder %s73, %s74
      %p86 = scmp.eq.s32.totalorder %s22, 1
      %p87 = por %p85, %p86
      %p89 = scmp.ne.s32.totalorder %s74, %s88
      %p90 = scmp.eq.s32.totalorder %s22, 0
      %p91 = por %p89, %p90
      %s93 = sadd.s32 %s92, 1
      %p96 = scmp.eq.s32.totalorder %s16, 1
      %p97 = scmp.ne.s32.totalorder %s92, %s94
      %p98 = scmp.eq.s32.totalorder %s16, 0
      %p99 = por %p97, %p98
      %p100 = scmp.ne.s32.totalorder %s92, %s94
      %p101 = scmp.eq.s32.totalorder %s21, 1
      %p102 = por %p100, %p101
      %p103 = scmp.ne.s32.totalorder %s94, %s95
      %p104 = scmp.eq.s32.totalorder %s21, 0
      %p105 = por %p103, %p104
      %p106 = scmp.ne.s32.totalorder %s94, %s95
      %p107 = scmp.eq.s32.totalorder %s22, 1
      %p108 = por %p106, %p107
      %p110 = scmp.ne.s32.totalorder %s95, %s109
      %p111 = scmp.eq.s32.totalorder %s22, 0
      %p112 = por %p110, %p111
      %s114 = sadd.s32 %s113, 1
      %p117 = scmp.eq.s32.totalorder %s16, 1
      %p118 = scmp.ne.s32.totalorder %s113, %s115
      %p119 = scmp.eq.s32.totalorder %s16, 0
      %p120 = por %p118, %p119
      %p121 = scmp.ne.s32.totalorder %s113, %s115
      %p122 = scmp.eq.s32.totalorder %s21, 1
      %p123 = por %p121, %p122
      %p124 = scmp.ne.s32.totalorder %s115, %s116
      %p125 = scmp.eq.s32.totalorder %s21, 0
      %p126 = por %p124, %p125
      %p127 = scmp.ne.s32.totalorder %s115, %s116
      %p128 = scmp.eq.s32.totalorder %s22, 1
      %p129 = por %p127, %p128
      %p131 = scmp.ne.s32.totalorder %s116, %s130
      %p132 = scmp.eq.s32.totalorder %s22, 0
      %p133 = por %p131, %p132
      %s134 = ssub.s32 %s16, %s23
      %p135 = scmp.eq.s32.totalorder %s134, 0
      %s137 = sadd.s32 %s136, 1
      %s138 = scalar_select %p135, %s136, %s137
      %p141 = pneg %p135
      %p142 = scmp.eq.s32.totalorder %s16, 1
      %p143 = por %p141, %p142
      %p144 = scmp.ne.s32.totalorder %s136, %s139
      %p145 = scmp.eq.s32.totalorder %s16, 0
      %p146 = por %p144, %p145
      %p147 = scmp.ne.s32.totalorder %s136, %s139
      %p148 = scmp.eq.s32.totalorder %s21, 1
      %p149 = por %p147, %p148
      %p150 = scmp.ne.s32.totalorder %s139, %s140
      %p151 = scmp.eq.s32.totalorder %s21, 0
      %p152 = por %p150, %p151
      %p153 = scmp.ne.s32.totalorder %s139, %s140
      %p154 = scmp.eq.s32.totalorder %s22, 1
      %p155 = por %p153, %p154
      %p157 = scmp.ne.s32.totalorder %s140, %s156
      %p158 = scmp.eq.s32.totalorder %s22, 0
      %p159 = por %p157, %p158
      %p160 = scmp.le.s32.totalorder 1, %s16
      %p161 = scmp.lt.s32.totalorder %s16, 3
      %p162 = pnand %p160, %p161
      %p163 = pneg %p162
      // Predicated region
      $region9: #{_lambda_.1} parent=5 // pred_check
        _
      $region10: #{_lambda_.1} parent=5 // pred_check_branch
        %165 = sbr.rel (%p162) target = $region12
      $region11: #{_lambda_.1} parent=5 // pred_region
        %s166 = ssub.s32 %s16, 1
        // Predicated region
        $region13: #{_lambda_.1} parent=11 // pred_check
          %p167 = pneg %p63
        $region14: #{_lambda_.1} parent=11 // pred_check_branch
          %169 = sbr.rel (%p167) target = $region16
        $region15: #{_lambda_.1} parent=11 // pred_region
          %s171 = ssub.s32 1024, 1024
          %172 = vsyncadd [#allocation3], %s171
          %s173 = sshll.u32 [#allocation2], 4
          %s174 = int_to_ptr.vmem [resolvable:$true] %s173
          %179 = dma.hbm_to_vmem [thread:$0]  %s1, 1024, %s174, [#allocation3], 64, 64, 4
        $region16: #{_lambda_.1} parent=11 // pred_fallthru
          _
        // Predicated region
        $region17: #{_lambda_.1} parent=11 // pred_check
          %p180 = pneg %p84
        $region18: #{_lambda_.1} parent=11 // pred_check_branch
          %182 = sbr.rel (%p180) target = $region20
        $region19: #{_lambda_.1} parent=11 // pred_region
          _
        $region20: #{_lambda_.1} parent=11 // pred_fallthru
          _
        // Predicated region
        $region21: #{_lambda_.1} parent=11 // pred_check
          %p183 = pneg %p105
        $region22: #{_lambda_.1} parent=11 // pred_check_branch
          %185 = sbr.rel (%p183) target = $region24
        $region23: #{_lambda_.1} parent=11 // pred_region
          %s187 = ssub.s32 1024, 1024
          %188 = vsyncadd [#allocation6], %s187
          %s189 = sshll.u32 [#allocation5], 4
          %s190 = int_to_ptr.vmem [resolvable:$true] %s189
          %195 = dma.hbm_to_vmem [thread:$0]  %s3, 1024, %s190, [#allocation6], 64, 64, 4
        $region24: #{_lambda_.1} parent=11 // pred_fallthru
          _
        // Predicated region
        $region25: #{_lambda_.1} parent=11 // pred_check
          %p196 = pneg %p126
        $region26: #{_lambda_.1} parent=11 // pred_check_branch
          %198 = sbr.rel (%p196) target = $region28
        $region27: #{_lambda_.1} parent=11 // pred_region
          _
        $region28: #{_lambda_.1} parent=11 // pred_fallthru
          _
      $region12: #{_lambda_.1} parent=5 // pred_fallthru
        _
      %p199 = scmp.lt.s32.totalorder %s16, 2
      // Predicated region
      $region29: #{_lambda_.1} parent=5 // pred_check
        %p200 = pneg %p199
      $region30: #{_lambda_.1} parent=5 // pred_check_branch
        %202 = sbr.rel (%p200) target = $region32
      $region31: #{_lambda_.1} parent=5 // pred_region
        // Predicated region
        $region33: #{_lambda_.1} parent=31 // pred_check
          %p203 = pneg %p36
        $region34: #{_lambda_.1} parent=31 // pred_check_branch
          %205 = sbr.rel (%p203) target = $region36
        $region35: #{_lambda_.1} parent=31 // pred_region
          %p206 = scmp.lt.s32.totalorder %s16, 1
          %s207 = scalar_select %p206, %s16, 1
          %s208 = smul.addr %s207, 8
          %s209 = scalar_lea.vmem %s0, %s208
        $region36: #{_lambda_.1} parent=31 // pred_fallthru
          _
      $region32: #{_lambda_.1} parent=5 // pred_fallthru
        _
      %p210 = scmp.le.s32.totalorder 1, %s16
      %p211 = scmp.lt.s32.totalorder %s16, 3
      %p212 = pnand %p210, %p211
      %p213 = pneg %p212
      // Predicated region
      $region37: #{_lambda_.1} parent=5 // pred_check
        _
      $region38: #{_lambda_.1} parent=5 // pred_check_branch
        %215 = sbr.rel (%p212) target = $region40
      $region39: #{_lambda_.1} parent=5 // pred_region
        %s216 = ssub.s32 %s16, 1
        // Predicated region
        $region41: #{_lambda_.1} parent=39 // pred_check
          %p217 = pneg %p63
        $region42: #{_lambda_.1} parent=39 // pred_check_branch
          %219 = sbr.rel (%p217) target = $region44
        $region43: #{_lambda_.1} parent=39 // pred_region
          %220 = dma.done [#allocation3], 1024
        $region44: #{_lambda_.1} parent=39 // pred_fallthru
          _
        // Predicated region
        $region45: #{_lambda_.1} parent=39 // pred_check
          %p221 = pneg %p105
        $region46: #{_lambda_.1} parent=39 // pred_check_branch
          %223 = sbr.rel (%p221) target = $region48
        $region47: #{_lambda_.1} parent=39 // pred_region
          %224 = dma.done [#allocation6], 1024
        $region48: #{_lambda_.1} parent=39 // pred_fallthru
          _
        %p225 = scmp.lt.s32.totalorder %s21, 1
        %s226 = scalar_select %p225, %s21, 1
        %s227 = smul.addr %s226, 8
        %s228 = scalar_lea.vmem %s0, %s227
        %p229 = pneg %p42
        %p230 = pneg %p39
        %p231 = pneg %p63
        %p232 = pneg %p60
        %p233 = pneg %p84
        %p234 = pneg %p81
        %p235 = pneg %p105
        %p236 = pneg %p102
        %p237 = pneg %p126
        %p238 = pneg %p123
        %p239 = pneg %p152
        %p240 = pneg %p149
        %s241 = sand.u32 %s139, 1
        %s242 = scalar_lea.sflag [#allocation4], %s241
        %s243 = sand.u32 %s139, 1
        %s244 = smul.addr %s243, 8
        %s245 = scalar_lea.vmem [#allocation7], %s244
        %p246 = scmp.lt.s32.totalorder %s21, 1
        %s247 = scalar_select %p246, %s21, 1
        %s248 = smul.addr %s247, 8
        %s249 = scalar_lea.vmem %s0, %s248
        %v251 = vld [vmem:[%s249] sm:$0xff]
        %v252 = vld [vmem:[#allocation2] sm:$0xf]
        %v253 = vld [vmem:[#allocation2 + $0x4] sm:$0xf]
        %v254 = vld [vmem:[#allocation2 + $0x8] sm:$0xf]
        %v255 = vld [vmem:[#allocation2 + $0xc] sm:$0xf]
        %v256 = vld [vmem:[#allocation2 + $0x10] sm:$0xf]
        %v257 = vld [vmem:[#allocation2 + $0x14] sm:$0xf]
        %v258 = vld [vmem:[#allocation2 + $0x18] sm:$0xf]
        %v259 = vld [vmem:[#allocation2 + $0x1c] sm:$0xf]
        %v260 = vld [vmem:[#allocation2 + $0x20] sm:$0xf]
        %v261 = vld [vmem:[#allocation2 + $0x24] sm:$0xf]
        %v262 = vld [vmem:[#allocation2 + $0x28] sm:$0xf]
        %v263 = vld [vmem:[#allocation2 + $0x2c] sm:$0xf]
        %v264 = vld [vmem:[#allocation2 + $0x30] sm:$0xf]
        %v265 = vld [vmem:[#allocation2 + $0x34] sm:$0xf]
        %v266 = vld [vmem:[#allocation2 + $0x38] sm:$0xf]
        %v267 = vld [vmem:[#allocation2 + $0x3c] sm:$0xf]
        %v268 = vld [vmem:[%s2] sm:$0x1]
        %v269 = vpack.c.bf16 %v251, %v251
        %v271 = vlaneseq
        %v272 = vshrl.u32 %v271, 7
        %v273 = vsub.s32 0, %v272
        %v274 = vrot.slane %v268, %v273
        %v292 = vunpack.c.l.b16 %v252
        %v293 = vunpack.c.l.b16 %v253
        %v294 = vunpack.c.l.b16 %v254
        %v295 = vunpack.c.l.b16 %v255
        %v296 = vunpack.c.l.b16 %v256
        %v297 = vunpack.c.l.b16 %v257
        %v298 = vunpack.c.l.b16 %v258
        %v299 = vunpack.c.l.b16 %v259
        %v300 = vunpack.c.l.b16 %v260
        %v301 = vunpack.c.l.b16 %v261
        %v302 = vunpack.c.l.b16 %v262
        %v303 = vunpack.c.l.b16 %v263
        %v304 = vunpack.c.l.b16 %v264
        %v305 = vunpack.c.l.b16 %v265
        %v306 = vunpack.c.l.b16 %v266
        %v307 = vunpack.c.l.b16 %v267
        %v308 = vpack.c.b16 %v293, %v292
        %v309 = vpack.c.b16 %v295, %v294
        %v310 = vpack.c.b16 %v297, %v296
        %v311 = vpack.c.b16 %v299, %v298
        %v312 = vpack.c.b16 %v301, %v300
        %v313 = vpack.c.b16 %v303, %v302
        %v314 = vpack.c.b16 %v305, %v304
        %v315 = vpack.c.b16 %v307, %v306
        %324 = vmatprep.subr.bf16.mxu0 0
        %325 = vmatpush1.bf16.msra.mxu0 %v308
        %326 = vmatprep.subr.bf16.mxu0 0
        %327 = vmatpush1.bf16.msra.mxu0 %v309
        %328 = vmatprep.subr.bf16.mxu0 0
        %329 = vmatpush1.bf16.msra.mxu0 %v310
        %330 = vmatprep.subr.bf16.mxu0 0
        %331 = vmatpush1.bf16.msra.mxu0 %v311
        %332 = vmatprep.subr.bf16.mxu0 0
        %333 = vmatpush1.bf16.msra.mxu0 %v312
        %334 = vmatprep.subr.bf16.mxu0 0
        %335 = vmatpush1.bf16.msra.mxu0 %v313
        %336 = vmatprep.subr.bf16.mxu0 0
        %337 = vmatpush1.bf16.msra.mxu0 %v314
        %338 = vmatprep.subr.bf16.mxu0 0
        %339 = vmatpush1.bf16.msra.mxu0 %v315
        %340 = vmatprep.subr.bf16.mxu0 0
        %341 = vmatpush1.bf16.msra.mxu0 0
        %342 = vmatprep.subr.bf16.mxu0 0
        %343 = vmatpush1.bf16.msra.mxu0 0
        %344 = vmatprep.subr.bf16.mxu0 0
        %345 = vmatpush1.bf16.msra.mxu0 0
        %346 = vmatprep.subr.bf16.mxu0 0
        %347 = vmatpush1.bf16.msra.mxu0 0
        %348 = vmatprep.subr.bf16.mxu0 0
        %349 = vmatpush1.bf16.msra.mxu0 0
        %350 = vmatprep.subr.bf16.mxu0 0
        %351 = vmatpush1.bf16.msra.mxu0 0
        %352 = vmatprep.subr.bf16.mxu0 0
        %353 = vmatpush1.bf16.msra.mxu0 0
        %354 = vmatprep.subr.bf16.mxu0 0
        %355 = vmatpush1.bf16.msra.mxu0 0
        %356 = vmatprep.mubr.bf16.mxu0 0
        %357 = vmatmul.mubr.bf16.gmra.mrb[0].mxu0 %v269
        %v358 = vpop.f32.mrb[0].mxu0
        %v359 = vadd.f32 %v274, %v358
        %v360 = vpop.f32.mrb[0].mxu0
        %v361 = vpop.f32.mrb[0].mxu0
        %v362 = vpop.f32.mrb[0].mxu0
        %363 = vdwg.mxu0
        %v364 = vmax.f32 %v359, 0.0
        %v365 = vld [vmem:[#allocation5] sm:$0xf]
        %v366 = vld [vmem:[#allocation5 + $0x4] sm:$0xf]
        %v367 = vld [vmem:[#allocation5 + $0x8] sm:$0xf]
        %v368 = vld [vmem:[#allocation5 + $0xc] sm:$0xf]
        %v369 = vld [vmem:[#allocation5 + $0x10] sm:$0xf]
        %v370 = vld [vmem:[#allocation5 + $0x14] sm:$0xf]
        %v371 = vld [vmem:[#allocation5 + $0x18] sm:$0xf]
        %v372 = vld [vmem:[#allocation5 + $0x1c] sm:$0xf]
        %v373 = vld [vmem:[#allocation5 + $0x20] sm:$0xf]
        %v374 = vld [vmem:[#allocation5 + $0x24] sm:$0xf]
        %v375 = vld [vmem:[#allocation5 + $0x28] sm:$0xf]
        %v376 = vld [vmem:[#allocation5 + $0x2c] sm:$0xf]
        %v377 = vld [vmem:[#allocation5 + $0x30] sm:$0xf]
        %v378 = vld [vmem:[#allocation5 + $0x34] sm:$0xf]
        %v379 = vld [vmem:[#allocation5 + $0x38] sm:$0xf]
        %v380 = vld [vmem:[#allocation5 + $0x3c] sm:$0xf]
        %v381 = vld [vmem:[%s4] sm:$0x1]
        %v382 = vpack.c.bf16 %v364, %v364
        %v384 = vlaneseq
        %v385 = vshrl.u32 %v384, 7
        %v386 = vsub.s32 0, %v385
        %v387 = vrot.slane %v381, %v386
        %v405 = vunpack.c.l.b16 %v365
        %v406 = vunpack.c.l.b16 %v366
        %v407 = vunpack.c.l.b16 %v367
        %v408 = vunpack.c.l.b16 %v368
        %v409 = vunpack.c.l.b16 %v369
        %v410 = vunpack.c.l.b16 %v370
        %v411 = vunpack.c.l.b16 %v371
        %v412 = vunpack.c.l.b16 %v372
        %v413 = vunpack.c.l.b16 %v373
        %v414 = vunpack.c.l.b16 %v374
        %v415 = vunpack.c.l.b16 %v375
        %v416 = vunpack.c.l.b16 %v376
        %v417 = vunpack.c.l.b16 %v377
        %v418 = vunpack.c.l.b16 %v378
        %v419 = vunpack.c.l.b16 %v379
        %v420 = vunpack.c.l.b16 %v380
        %v421 = vpack.c.b16 %v406, %v405
        %v422 = vpack.c.b16 %v408, %v407
        %v423 = vpack.c.b16 %v410, %v409
        %v424 = vpack.c.b16 %v412, %v411
        %v425 = vpack.c.b16 %v414, %v413
        %v426 = vpack.c.b16 %v416, %v415
        %v427 = vpack.c.b16 %v418, %v417
        %v428 = vpack.c.b16 %v420, %v419
        %437 = vmatprep.subr.bf16.mxu0 0
        %438 = vmatpush1.bf16.msra.mxu0 %v421
        %439 = vmatprep.subr.bf16.mxu0 0
        %440 = vmatpush1.bf16.msra.mxu0 %v422
        %441 = vmatprep.subr.bf16.mxu0 0
        %442 = vmatpush1.bf16.msra.mxu0 %v423
        %443 = vmatprep.subr.bf16.mxu0 0
        %444 = vmatpush1.bf16.msra.mxu0 %v424
        %445 = vmatprep.subr.bf16.mxu0 0
        %446 = vmatpush1.bf16.msra.mxu0 %v425
        %447 = vmatprep.subr.bf16.mxu0 0
        %448 = vmatpush1.bf16.msra.mxu0 %v426
        %449 = vmatprep.subr.bf16.mxu0 0
        %450 = vmatpush1.bf16.msra.mxu0 %v427
        %451 = vmatprep.subr.bf16.mxu0 0
        %452 = vmatpush1.bf16.msra.mxu0 %v428
        %453 = vmatprep.subr.bf16.mxu0 0
        %454 = vmatpush1.bf16.msra.mxu0 0
        %455 = vmatprep.subr.bf16.mxu0 0
        %456 = vmatpush1.bf16.msra.mxu0 0
        %457 = vmatprep.subr.bf16.mxu0 0
        %458 = vmatpush1.bf16.msra.mxu0 0
        %459 = vmatprep.subr.bf16.mxu0 0
        %460 = vmatpush1.bf16.msra.mxu0 0
        %461 = vmatprep.subr.bf16.mxu0 0
        %462 = vmatpush1.bf16.msra.mxu0 0
        %463 = vmatprep.subr.bf16.mxu0 0
        %464 = vmatpush1.bf16.msra.mxu0 0
        %465 = vmatprep.subr.bf16.mxu0 0
        %466 = vmatpush1.bf16.msra.mxu0 0
        %467 = vmatprep.subr.bf16.mxu0 0
        %468 = vmatpush1.bf16.msra.mxu0 0
        %469 = vmatprep.mubr.bf16.mxu0 0
        %470 = vmatmul.mubr.bf16.gmra.mrb[0].mxu0 %v382
        %v471 = vpop.f32.mrb[0].mxu0
        %v472 = vadd.f32 %v387, %v471
        %v473 = vpop.f32.mrb[0].mxu0
        %v474 = vpop.f32.mrb[0].mxu0
        %v475 = vpop.f32.mrb[0].mxu0
        %476 = vdwg.mxu0
        %477 = vst [vmem:[%s245] sm:$0xff] %v472
        %s478 = sand.u32 %s139, 1
        %s479 = scalar_lea.sflag [#allocation4], %s478
        %s480 = sand.u32 %s139, 1
        %s481 = smul.addr %s480, 8
        %s482 = scalar_lea.vmem [#allocation7], %s481
        // Predicated region
        $region49: #{_lambda_.1} parent=39 // pred_check
          %p483 = pneg %p149
        $region50: #{_lambda_.1} parent=39 // pred_check_branch
          %485 = sbr.rel (%p483) target = $region52
        $region51: #{_lambda_.1} parent=39 // pred_region
          %s487 = ssub.s32 128, 128
          %488 = vsyncadd %s479, %s487
          %s489 = smul.addr %s21, 128
          %s490 = scalar_lea.hbm %s5, %s489
          %s492 = sshll.u32 %s482, 4
          %s493 = int_to_ptr.vmem [resolvable:$true] %s492
          %495 = dma.vmem_to_hbm [thread:$0]  %s493, 128, %s490, %s479
        $region52: #{_lambda_.1} parent=39 // pred_fallthru
          _
      $region40: #{_lambda_.1} parent=5 // pred_fallthru
        _
      %p496 = scmp.le.s32.totalorder 2, %s16
      // Predicated region
      $region53: #{_lambda_.1} parent=5 // pred_check
        %p497 = pneg %p496
      $region54: #{_lambda_.1} parent=5 // pred_check_branch
        %499 = sbr.rel (%p497) target = $region56
      $region55: #{_lambda_.1} parent=5 // pred_region
        %s500 = ssub.s32 %s16, 2
        // Predicated region
        $region57: #{_lambda_.1} parent=55 // pred_check
          %p501 = pneg %p155
        $region58: #{_lambda_.1} parent=55 // pred_check_branch
          %503 = sbr.rel (%p501) target = $region60
        $region59: #{_lambda_.1} parent=55 // pred_region
          %s504 = sand.u32 %s140, 1
          %s505 = scalar_lea.sflag [#allocation4], %s504
          %s506 = sand.u32 %s140, 1
          %s507 = smul.addr %s506, 8
          %s508 = scalar_lea.vmem [#allocation7], %s507
          %509 = dma.done %s505, 128
        $region60: #{_lambda_.1} parent=55 // pred_fallthru
          _
      $region56: #{_lambda_.1} parent=5 // pred_fallthru
        _
    $region6: #{_lambda_.1} parent=1 // loop_footer
      %s20 = sadd.s32 1, %s16
    $region7: #{_lambda_.1} parent=1 // loop_footer_branch
      %15 = sbr.rel target = $region3
    $region8: #{_lambda_.1} parent=1 // loop_exit
      _
    %510 = vsyncpa [#allocation3], 1
    %s511 = scalar_lea.sflag [#allocation3], 1
    %512 = vsyncpa %s511, 1
    %513 = vsyncpa [#allocation6], 1
    %514 = vsyncpa [#allocation4], 1
    %s515 = scalar_lea.sflag [#allocation4], 1
    %516 = vsyncpa %s515, 1

</llo_original>
